<compile_context>
chip_gen: v6e
topology: v6e:2x2x1
jax: 0.10.0
libtpu: 0.0.40
codegen_flags: <defaults>
</compile_context>

<pallas_src>
import numpy as np
import jax
import jax.numpy as jnp
from jax.experimental import pallas as pl
from jax.experimental.pallas import tpu as pltpu

# ------------------------- problem sizes (small) -------------------------
B = 2                      # batch
T = 8                      # sequence length
HIDDEN = 32                # hidden_size
OBJ_HIDDEN = 32            # obj_hidden_size
CIN = HIDDEN + OBJ_HIDDEN  # dense input dim = hidden + obj_hidden
EPS = 1e-12                # nn.LayerNorm(hidden_size, eps=1e-12)


# ------------------------------ the kernel -------------------------------
def mbert_output_kernel(h_ref, x_ref, w_ref, b_ref, g_ref, beta_ref, o_ref):
    h = h_ref[...]                                            # (N, CIN)
    x = x_ref[...]                                            # (N, HIDDEN)

    # dense(hidden_states) + bias, then residual add  -> single MXU push
    y = jnp.dot(h, w_ref[...], preferred_element_type=jnp.float32)
    y = y + b_ref[...] + x

    # LayerNorm over the last dim (eps = 1e-12), rsqrt on the EUP
    mu = jnp.mean(y, axis=-1, keepdims=True)
    var = jnp.mean((y - mu) ** 2, axis=-1, keepdims=True)
    inv = jax.lax.rsqrt(var + EPS)
    o_ref[...] = (y - mu) * inv * g_ref[...] + beta_ref[...]


# ------------------------------ wrapper -----------------------------------
def mbert_output(hidden_states, input_tensor, params):
    """hidden_states: (B, T, HIDDEN+OBJ_HIDDEN), input_tensor: (B, T, HIDDEN)."""
    w, b, gamma, beta = params
    Bb, Tt, cin = hidden_states.shape
    c = input_tensor.shape[-1]

    # Fold batch into rows: one kernel body, no grid, full VMEM residency.
    h2 = hidden_states.reshape(Bb * Tt, cin)
    x2 = input_tensor.reshape(Bb * Tt, c)

    vmem = pl.BlockSpec(memory_space=pltpu.MemorySpace.VMEM)
    out = pl.pallas_call(
        mbert_output_kernel,
        out_shape=jax.ShapeDtypeStruct((Bb * Tt, c), jnp.float32),
        in_specs=[vmem] * 6,
        out_specs=vmem,
    )(h2, x2, w, b, gamma, beta)
    return out.reshape(Bb, Tt, c)


# -------------------------- pure-JAX reference -----------------------------
def reference(hidden_states, input_tensor, params):
    w, b, gamma, beta = params
    hp = jax.lax.Precision.HIGHEST
    y = jnp.einsum("btc,cd->btd", hidden_states, w, precision=hp) + b
    y = y + input_tensor
    mu = jnp.mean(y, axis=-1, keepdims=True)
    var = jnp.mean((y - mu) ** 2, axis=-1, keepdims=True)
    return (y - mu) / jnp.sqrt(var + EPS) * gamma + beta


# --------------------------------- main ------------------------------------
if __name__ == "__main__":
    rng = jax.random.PRNGKey(0)
    ks = jax.random.split(rng, 6)
    n = lambda k, s, sc=1.0: jax.random.normal(k, s, jnp.float32) * sc

    hidden_states = n(ks[0], (B, T, CIN))          # attention output (concat dims)
    input_tensor = n(ks[1], (B, T, HIDDEN))        # residual input

    params = (
        n(ks[2], (CIN, HIDDEN), 0.1),              # dense weight (in, out) layout
        n(ks[3], (1, HIDDEN), 0.1),                # dense bias
        jnp.ones((1, HIDDEN), jnp.float32),        # LayerNorm gamma
        jnp.zeros((1, HIDDEN), jnp.float32),       # LayerNorm beta
    )

    out = mbert_output(hidden_states, input_tensor, params)
    out = jax.block_until_ready(out)

    want = reference(hidden_states, input_tensor, params)
    np.testing.assert_allclose(np.asarray(out), np.asarray(want),
                               rtol=2e-3, atol=2e-3)
    print("KERNEL_OK")
</pallas_src>

<mosaic_0001>
module attributes {stable_mosaic.version = 11 : i64} {
  func.func @mbert_output_kernel(%arg0: memref<16x64xf32, #tpu.memory_space<vmem>>, %arg1: memref<16x32xf32, #tpu.memory_space<vmem>>, %arg2: memref<64x32xf32, #tpu.memory_space<vmem>>, %arg3: memref<1x32xf32, #tpu.memory_space<vmem>>, %arg4: memref<1x32xf32, #tpu.memory_space<vmem>>, %arg5: memref<1x32xf32, #tpu.memory_space<vmem>>, %arg6: memref<16x32xf32, #tpu.memory_space<vmem>>) attributes {dimension_semantics = [], scalar_prefetch = 0 : i64, scratch_operands = 0 : i64, tpu.core_type = #tpu.core_type<tc>} {
    %c0 = arith.constant 0 : index
    %c0_0 = arith.constant 0 : index
    %0 = vector.load %arg0[%c0, %c0_0] : memref<16x64xf32, #tpu.memory_space<vmem>>, vector<16x64xf32>
    %c0_1 = arith.constant 0 : index
    %c0_2 = arith.constant 0 : index
    %1 = vector.load %arg1[%c0_1, %c0_2] : memref<16x32xf32, #tpu.memory_space<vmem>>, vector<16x32xf32>
    %c0_3 = arith.constant 0 : index
    %c0_4 = arith.constant 0 : index
    %2 = vector.load %arg2[%c0_3, %c0_4] : memref<64x32xf32, #tpu.memory_space<vmem>>, vector<64x32xf32>
    %cst = arith.constant dense<0.000000e+00> : vector<16x32xf32>
    %3 = tpu.matmul %0, %2, %cst {dimension_numbers = #tpu.dot_dimension_numbers<[1], [0], [0], [1], [0, 0, 1, 1], [], []>} : vector<16x64xf32>, vector<64x32xf32>, vector<16x32xf32> -> vector<16x32xf32>
    %c0_5 = arith.constant 0 : index
    %c0_6 = arith.constant 0 : index
    %4 = vector.load %arg3[%c0_5, %c0_6] : memref<1x32xf32, #tpu.memory_space<vmem>>, vector<1x32xf32>
    %5 = vector.broadcast %4 : vector<1x32xf32> to vector<16x32xf32>
    %6 = arith.addf %3, %5 : vector<16x32xf32>
    %7 = arith.addf %6, %1 : vector<16x32xf32>
    %cst_7 = arith.constant dense<0.000000e+00> : vector<16xf32>
    %8 = vector.multi_reduction <add>, %7, %cst_7 [1] : vector<16x32xf32> to vector<16xf32>
    %9 = vector.shape_cast %8 : vector<16xf32> to vector<16x1xf32>
    %cst_8 = arith.constant 3.200000e+01 : f32
    %10 = vector.broadcast %cst_8 : f32 to vector<16x1xf32>
    %11 = arith.divf %9, %10 : vector<16x1xf32>
    %12 = vector.broadcast %11 : vector<16x1xf32> to vector<16x32xf32>
    %13 = arith.subf %7, %12 : vector<16x32xf32>
    %14 = arith.mulf %13, %13 : vector<16x32xf32>
    %cst_9 = arith.constant dense<0.000000e+00> : vector<16xf32>
    %15 = vector.multi_reduction <add>, %14, %cst_9 [1] : vector<16x32xf32> to vector<16xf32>
    %16 = vector.shape_cast %15 : vector<16xf32> to vector<16x1xf32>
    %cst_10 = arith.constant 3.200000e+01 : f32
    %17 = vector.broadcast %cst_10 : f32 to vector<16x1xf32>
    %18 = arith.divf %16, %17 : vector<16x1xf32>
    %cst_11 = arith.constant 9.99999996E-13 : f32
    %19 = vector.broadcast %cst_11 : f32 to vector<16x1xf32>
    %20 = arith.addf %18, %19 : vector<16x1xf32>
    %21 = math.rsqrt %20 : vector<16x1xf32>
    %22 = vector.broadcast %11 : vector<16x1xf32> to vector<16x32xf32>
    %23 = arith.subf %7, %22 : vector<16x32xf32>
    %24 = vector.broadcast %21 : vector<16x1xf32> to vector<16x32xf32>
    %25 = arith.mulf %23, %24 : vector<16x32xf32>
    %c0_12 = arith.constant 0 : index
    %c0_13 = arith.constant 0 : index
    %26 = vector.load %arg4[%c0_12, %c0_13] : memref<1x32xf32, #tpu.memory_space<vmem>>, vector<1x32xf32>
    %27 = vector.broadcast %26 : vector<1x32xf32> to vector<16x32xf32>
    %28 = arith.mulf %25, %27 : vector<16x32xf32>
    %c0_14 = arith.constant 0 : index
    %c0_15 = arith.constant 0 : index
    %29 = vector.load %arg5[%c0_14, %c0_15] : memref<1x32xf32, #tpu.memory_space<vmem>>, vector<1x32xf32>
    %30 = vector.broadcast %29 : vector<1x32xf32> to vector<16x32xf32>
    %31 = arith.addf %28, %30 : vector<16x32xf32>
    %c0_16 = arith.constant 0 : index
    %c0_17 = arith.constant 0 : index
    %32 = vector.load %arg6[%c0_16, %c0_17] : memref<16x32xf32, #tpu.memory_space<vmem>>, vector<16x32xf32>
    tpu.vector_store %arg6[%c0_16, %c0_17], %31 {strides = array<i32>} : memref<16x32xf32, #tpu.memory_space<vmem>>, vector<16x32xf32>,
    return
  }
}

</mosaic_0001>

<llo_original>
// kernel: tpu_custom_call.1
$region0: #{tpu_custom_call.1}
  #allocation0 [shape = 'u32[]', space=smem, size = 0x4, offset = 0x4, fixed_abs, tag = 'smem constant byte address 0x4 - core index']
  #allocation1 [shape = 'u32[144,128]{1,0:T(1,128)}', space=vmem, size = 0x12000, scoped, tag = 'internal scratch']
  %s0 = inlined_call_operand.vmem [shape: f32[16,64], index: 0, kind: input, shape index: {}]
  %s1 = inlined_call_operand.vmem [shape: f32[16,32], index: 1, kind: input, shape index: {}]
  %s2 = inlined_call_operand.vmem [shape: f32[64,32], index: 2, kind: input, shape index: {}]
  %s3 = inlined_call_operand.vmem [shape: f32[1,32], index: 3, kind: input, shape index: {}]
  %s4 = inlined_call_operand.vmem [shape: f32[1,32], index: 4, kind: input, shape index: {}]
  %s5 = inlined_call_operand.vmem [shape: f32[1,32], index: 5, kind: input, shape index: {}]
  %s6 = inlined_call_operand.hbm [shape: f32[16,32], index: 6, kind: output, shape index: {}]
  %s7 = sld [smem:[#allocation0]]
  $region34: #{tpu_custom_call.1} parent=0
    _
  %s9 = ssub.s32 1, %s7
  %s10 = scalar_select 0, %s9, %s7
  $region1: #{tpu_custom_call.1} parent=0
    #allocation2 [shape = 'u8[8192]{0}', space=vmem, size = 0x2000, scoped, tag = 'output window, operand 0, single buffered']
    #allocation3 [shape = 's32[1]{0}', space=sflag, size = 0x4, scoped, tag = 'scoped memory for tpu_custom_call.1']
    %11 = vsyncpa [#allocation3], 0
    // Predicated region
    $region2: #{tpu_custom_call.1} parent=1 // pred_check
      _
    $region3: #{tpu_custom_call.1} parent=1 // pred_check_branch
      %13 = sbr.rel (0) target = $region5
    $region4: #{tpu_custom_call.1} parent=1 // pred_region
      _
    $region5: #{tpu_custom_call.1} parent=1 // pred_fallthru
      _
    // Predicated region
    $region6: #{tpu_custom_call.1} parent=1 // pred_check
      _
    $region7: #{tpu_custom_call.1} parent=1 // pred_check_branch
      %15 = sbr.rel (0) target = $region9
    $region8: #{tpu_custom_call.1} parent=1 // pred_region
      _
    $region9: #{tpu_custom_call.1} parent=1 // pred_fallthru
      _
    // Predicated region
    $region10: #{tpu_custom_call.1} parent=1 // pred_check
      _
    $region11: #{tpu_custom_call.1} parent=1 // pred_check_branch
      %17 = sbr.rel (0) target = $region13
    $region12: #{tpu_custom_call.1} parent=1 // pred_region
      _
    $region13: #{tpu_custom_call.1} parent=1 // pred_fallthru
      _
    // Predicated region
    $region14: #{tpu_custom_call.1} parent=1 // pred_check
      _
    $region15: #{tpu_custom_call.1} parent=1 // pred_check_branch
      %19 = sbr.rel (0) target = $region17
    $region16: #{tpu_custom_call.1} parent=1 // pred_region
      _
    $region17: #{tpu_custom_call.1} parent=1 // pred_fallthru
      _
    // Predicated region
    $region18: #{tpu_custom_call.1} parent=1 // pred_check
      _
    $region19: #{tpu_custom_call.1} parent=1 // pred_check_branch
      %21 = sbr.rel (0) target = $region21
    $region20: #{tpu_custom_call.1} parent=1 // pred_region
      _
    $region21: #{tpu_custom_call.1} parent=1 // pred_fallthru
      _
    // Predicated region
    $region22: #{tpu_custom_call.1} parent=1 // pred_check
      _
    $region23: #{tpu_custom_call.1} parent=1 // pred_check_branch
      %23 = sbr.rel (0) target = $region25
    $region24: #{tpu_custom_call.1} parent=1 // pred_region
      _
    $region25: #{tpu_custom_call.1} parent=1 // pred_fallthru
      _
    %v24 = vld [vmem:[%s0] sm:$0xff]
    %v25 = vld [vmem:[%s0 + $0x8] sm:$0xff]
    %v26 = vld [vmem:[%s1] sm:$0xff]
    %v27 = vld [vmem:[%s1 + $0x8] sm:$0xff]
    %v28 = vld [vmem:[%s2] sm:$0xff]
    %v29 = vld [vmem:[%s2 + $0x8] sm:$0xff]
    %v30 = vld [vmem:[%s2 + $0x10] sm:$0xff]
    %v31 = vld [vmem:[%s2 + $0x18] sm:$0xff]
    %v32 = vld [vmem:[%s2 + $0x20] sm:$0xff]
    %v33 = vld [vmem:[%s2 + $0x28] sm:$0xff]
    %v34 = vld [vmem:[%s2 + $0x30] sm:$0xff]
    %v35 = vld [vmem:[%s2 + $0x38] sm:$0xff]
    %v36 = vld [vmem:[%s3] sm:$0x1]
    %v38 = vlaneseq
    %v39 = vshrl.u32 %v38, 7
    %v40 = vsub.s32 0, %v39
    %v41 = vrot.slane %v36, %v40
    %vm43 = vcmask 523264
    %v45 = vsel %vm43, %v24, 0
    %v48 = vsel %vm43, %v25, 0
    %50 = vmatprep.subr.mxu0 0.0
    %51 = vmatpush1.msra.mxu0 0.0
    %52 = vmatprep.subr.mxu0 0.0
    %53 = vmatpush1.msra.mxu0 0.0
    %54 = vmatprep.subr.mxu0 0.0
    %55 = vmatpush1.msra.mxu0 0.0
    %56 = vmatprep.subr.mxu0 0.0
    %57 = vmatpush1.msra.mxu0 0.0
    %58 = vmatprep.subr.mxu0 0.0
    %59 = vmatpush1.msra.mxu0 0.0
    %60 = vmatprep.subr.mxu0 0.0
    %61 = vmatpush1.msra.mxu0 0.0
    %62 = vmatprep.subr.mxu0 0.0
    %63 = vmatpush1.msra.mxu0 0.0
    %64 = vmatprep.subr.mxu0 0.0
    %65 = vmatpush1.msra.mxu0 0.0
    %66 = vmatprep.subr.mxu0 0.0
    %67 = vmatpush1.msra.mxu0 %v35
    %68 = vmatprep.subr.mxu0 0.0
    %69 = vmatpush1.msra.mxu0 %v34
    %70 = vmatprep.subr.mxu0 0.0
    %71 = vmatpush1.msra.mxu0 %v33
    %72 = vmatprep.subr.mxu0 0.0
    %73 = vmatpush1.msra.mxu0 %v32
    %74 = vmatprep.subr.mxu0 0.0
    %75 = vmatpush1.msra.mxu0 %v31
    %76 = vmatprep.subr.mxu0 0.0
    %77 = vmatpush1.msra.mxu0 %v30
    %78 = vmatprep.subr.mxu0 0.0
    %79 = vmatpush1.msra.mxu0 %v29
    %80 = vmatprep.subr.mxu0 0.0
    %81 = vmatpush1.msra.mxu0 %v28
    %82 = vmatprep.subr.mxu0 0.0
    %83 = vmatpush2.msra.mxu0 0.0
    %84 = vmatprep.subr.mxu0 0.0
    %85 = vmatpush2.msra.mxu0 0.0
    %86 = vmatprep.subr.mxu0 0.0
    %87 = vmatpush2.msra.mxu0 0.0
    %88 = vmatprep.subr.mxu0 0.0
    %89 = vmatpush2.msra.mxu0 0.0
    %90 = vmatprep.subr.mxu0 0.0
    %91 = vmatpush2.msra.mxu0 0.0
    %92 = vmatprep.subr.mxu0 0.0
    %93 = vmatpush2.msra.mxu0 0.0
    %94 = vmatprep.subr.mxu0 0.0
    %95 = vmatpush2.msra.mxu0 0.0
    %96 = vmatprep.subr.mxu0 0.0
    %97 = vmatpush2.msra.mxu0 0.0
    %98 = vmatprep.subr.mxu0 0.0
    %99 = vmatpush2.msra.mxu0 0.0
    %100 = vmatprep.subr.mxu0 0.0
    %101 = vmatpush2.msra.mxu0 0.0
    %102 = vmatprep.subr.mxu0 0.0
    %103 = vmatpush2.msra.mxu0 0.0
    %104 = vmatprep.subr.mxu0 0.0
    %105 = vmatpush2.msra.mxu0 0.0
    %106 = vmatprep.subr.mxu0 0.0
    %107 = vmatpush2.msra.mxu0 0.0
    %108 = vmatprep.subr.mxu0 0.0
    %109 = vmatpush2.msra.mxu0 0.0
    %110 = vmatprep.subr.mxu0 0.0
    %111 = vmatpush2.msra.mxu0 0.0
    %112 = vmatprep.subr.mxu0 0.0
    %113 = vmatpush2.msra.mxu0 0.0
    %114 = vmatprep.mubr.f32.mxu0 0.0
    %115 = vmatmul.mubr.f32.gmra.mxu0 %v45
    %v116 = vpop.f32.mrf.mxu0
    %v117 = vadd.f32 %v41, %v116
    %v118 = vpop.f32.mrf.mxu0
    %119 = vmatprep.mubr.f32.mxu0 0.0
    %120 = vmatmul.mubr.f32.gmra.mxu0 %v48
    %v121 = vpop.f32.mrf.mxu0
    %v122 = vadd.f32 %v41, %v121
    %v123 = vpop.f32.mrf.mxu0
    %124 = vdwg.mxu0
    %v125 = vadd.f32 %v117, %v26
    %v126 = vadd.f32 %v122, %v27
    %vm127 = vcmask 261120
    %v128 = vsel %vm127, %v125, 0.0
    %129 = vadd.xlane.f32.xlu0 %v128
    %v130 = vpop.xlane.xlu0 %129
    %v131 = vsel %vm127, %v126, 0.0
    %132 = vadd.xlane.f32.xlu0 %v131
    %v133 = vpop.xlane.xlu0 %132
    %v134 = vrcp.pop 32.0
    %v135 = vmul.f32 %v130, %v134
    %v136 = vmul.f32 %v133, %v134
    %v137 = vsub.f32 %v125, %v135
    %v138 = vsub.f32 %v126, %v136
    %v139 = vmul.f32 %v137, %v137
    %v140 = vmul.f32 %v138, %v138
    %v141 = vsel %vm127, %v139, 0.0
    %142 = vadd.xlane.f32.xlu0 %v141
    %v143 = vpop.xlane.xlu0 %142
    %v144 = vsel %vm127, %v140, 0.0
    %145 = vadd.xlane.f32.xlu0 %v144
    %v146 = vpop.xlane.xlu0 %145
    %v147 = vmul.f32 %v143, %v134
    %v148 = vmul.f32 %v146, %v134
    %v149 = vadd.f32 %v147, 1e-12
    %v150 = vadd.f32 %v148, 1e-12
    %v151 = vrsqrt.pop %v149
    %v152 = vrsqrt.pop %v150
    %v153 = vmul.f32 %v137, %v151
    %v154 = vmul.f32 %v138, %v152
    %v155 = vld [vmem:[%s4] sm:$0x1]
    %v157 = vlaneseq
    %v158 = vshrl.u32 %v157, 7
    %v159 = vsub.s32 0, %v158
    %v160 = vrot.slane %v155, %v159
    %v162 = vmul.f32 %v153, %v160
    %v163 = vmul.f32 %v154, %v160
    %v164 = vld [vmem:[%s5] sm:$0x1]
    %v166 = vlaneseq
    %v167 = vshrl.u32 %v166, 7
    %v168 = vsub.s32 0, %v167
    %v169 = vrot.slane %v164, %v168
    %v171 = vadd.f32 %v162, %v169
    %v172 = vadd.f32 %v163, %v169
    %173 = vst.msk [vmem:[#allocation2] sm:$0xff] %vm127, %v171
    %174 = vst.msk [vmem:[#allocation2 + $0x8] sm:$0xff] %vm127, %v172
    // Predicated region
    $region26: #{tpu_custom_call.1} parent=1 // pred_check
      _
    $region27: #{tpu_custom_call.1} parent=1 // pred_check_branch
      %176 = sbr.rel (0) target = $region29
    $region28: #{tpu_custom_call.1} parent=1 // pred_region
      %s178 = ssub.s32 256, 256
      %179 = vsyncadd [#allocation3], %s178
      %s180 = sshll.u32 [#allocation2], 4
      %s181 = int_to_ptr.vmem [resolvable:$true] %s180
      %186 = dma.vmem_to_hbm [thread:$0]  %s181, 256, %s6, [#allocation3], 128, 128, 8
    $region29: #{tpu_custom_call.1} parent=1 // pred_fallthru
      _
    // Predicated region
    $region30: #{tpu_custom_call.1} parent=1 // pred_check
      _
    $region31: #{tpu_custom_call.1} parent=1 // pred_check_branch
      %188 = sbr.rel (0) target = $region33
    $region32: #{tpu_custom_call.1} parent=1 // pred_region
      %189 = dma.done [#allocation3], 256
    $region33: #{tpu_custom_call.1} parent=1 // pred_fallthru
      _
    %190 = vsyncpa [#allocation3], 1

</llo_original>
